<compile_context>
chip_gen: v5e
topology: v5e:2x2
jax: 0.10.0
libtpu: 0.0.40
codegen_flags: <defaults>
</compile_context>

<pallas_src>
import functools

import jax
import jax.numpy as jnp
from jax.experimental import pallas as pl
from jax.experimental.pallas import tpu as pltpu

NORMALIZE_EPS = 1e-12                 # F.normalize default eps
_VMEM_BUDGET = 8 * 1024 * 1024        # target live (double-buffered in+out) block bytes
_VMEM_LIMIT = 32 * 1024 * 1024        # scoped VMEM limit: safe on v5e/v6e/v7x


# ---------------------------------------------------------------------------
# Kernels
# ---------------------------------------------------------------------------
def _rmsnorm_kernel(x_ref, g_ref, o_ref, *, eps):
    # General path: one (tm, D) row tile, feature dim on the lane axis.
    x = x_ref[...].astype(jnp.float32)                        # cast on load
    sumsq = jnp.sum(x * x, axis=-1, keepdims=True)            # lane reduce (XLU)
    inv = jax.lax.rsqrt(jnp.maximum(sumsq, eps * eps))        # EUP rsqrt
    o_ref[...] = (x * inv * g_ref[...]).astype(o_ref.dtype)   # cast on store


def _rmsnorm_packed_kernel(x_ref, g_ref, m_ref, o_ref, *, eps):
    # Lane-packed path: 128//D logical rows per 128-lane physical row.
    # m_ref is a block-diagonal (128,128) 0/1 mask; (x*x) @ mask performs the
    # per-segment reduce AND broadcasts the sum back across each D-lane group.
    x = x_ref[...].astype(jnp.float32)
    sumsq = jnp.dot(x * x, m_ref[...],
                    preferred_element_type=jnp.float32,
                    precision=jax.lax.Precision.HIGHEST)      # full-f32 MXU passes
    inv = jax.lax.rsqrt(jnp.maximum(sumsq, eps * eps))
    o_ref[...] = (x * inv * g_ref[...]).astype(o_ref.dtype)


# ---------------------------------------------------------------------------
# Tile selection: biggest row tile that fits the VMEM budget, >= 2 grid steps
# when possible (v7x megacore), dtype-aware row granularity.
# ---------------------------------------------------------------------------
def _round_up(a, b):
    return -(-a // b) * b


def _pick_tile_rows(m, row_width, itemsize):
    row_mult = 8 * max(1, 4 // itemsize)            # 8 rows f32, 16 bf16, 32 int8
    live_per_row = 2 * 2 * row_width * itemsize     # 2 buffers x (in + out)
    tm = max(row_mult, (_VMEM_BUDGET // max(live_per_row, 1)) // row_mult * row_mult)
    if m <= tm:
        if m >= 2 * row_mult:
            tm = _round_up(-(-m // 2), row_mult)    # split so grid has >= 2 steps
        else:
            tm = m                                  # tiny input: single full block
    return min(tm, m)


# ---------------------------------------------------------------------------
# Wrapper
# ---------------------------------------------------------------------------
def rmsnorm(x, gamma, *, eps=NORMALIZE_EPS):
    orig_shape = x.shape
    D = orig_shape[-1]
    M = x.size // D
    itemsize = jnp.dtype(x.dtype).itemsize

    # Fold the dim**0.5 scale into gamma once (tiny, stays f32 for precision).
    g = gamma.astype(jnp.float32) * (float(D) ** 0.5)

    compiler_params = pltpu.CompilerParams(
        dimension_semantics=("parallel",),
        vmem_limit_bytes=_VMEM_LIMIT,
    )

    use_packed = (D < 128) and (128 % D == 0) and M > 0 and (M % (128 // D) == 0)

    if use_packed:
        reps = 128 // D
        Mp = M // reps
        xp = x.reshape(Mp, 128)                               # free view, native dtype
        gp = jnp.tile(g, reps).reshape(1, 128)                # gamma*sqrt(D), packed
        seg = jnp.arange(128, dtype=jnp.int32) // D
        mask = (seg[:, None] == seg[None, :]).astype(jnp.float32)  # (128,128) block-diag
        tm = _pick_tile_rows(Mp, 128, itemsize)
        out = pl.pallas_call(
            functools.partial(_rmsnorm_packed_kernel, eps=eps),
            out_shape=jax.ShapeDtypeStruct((Mp, 128), x.dtype),
            grid=(pl.cdiv(Mp, tm),),
            in_specs=[
                pl.BlockSpec((tm, 128), lambda i: (i, 0)),    # lane-packed x rows
                pl.BlockSpec((1, 128), lambda i: (0, 0)),     # packed gamma (resident)
                pl.BlockSpec((128, 128), lambda i: (0, 0)),   # segment mask (resident)
            ],
            out_specs=pl.BlockSpec((tm, 128), lambda i: (i, 0)),
            compiler_params=compiler_params,
        )(xp, gp, mask)
        return out.reshape(orig_shape)

    # General path: D >= 128 (or not cleanly lane-packable).
    x2 = x.reshape(M, D)                                      # native dtype, no copy
    g2 = g.reshape(1, D)
    tm = _pick_tile_rows(M, D, itemsize)
    out = pl.pallas_call(
        functools.partial(_rmsnorm_kernel, eps=eps),
        out_shape=jax.ShapeDtypeStruct((M, D), x.dtype),
        grid=(pl.cdiv(M, tm),),
        in_specs=[
            pl.BlockSpec((tm, D), lambda i: (i, 0)),          # x row tile
            pl.BlockSpec((1, D), lambda i: (0, 0)),           # gamma*sqrt(D) (resident)
        ],
        out_specs=pl.BlockSpec((tm, D), lambda i: (i, 0)),
        compiler_params=compiler_params,
    )(x2, g2)
    return out.reshape(orig_shape)


# ---------------------------------------------------------------------------
# Pure-JAX reference (mirrors the PyTorch math exactly; f32 result).
# ---------------------------------------------------------------------------
def rmsnorm_ref(x, gamma, eps=NORMALIZE_EPS):
    xf = x.astype(jnp.float32)
    norm = jnp.sqrt(jnp.sum(xf * xf, axis=-1, keepdims=True))
    normed = xf / jnp.maximum(norm, eps)
    return normed * (x.shape[-1] ** 0.5) * gamma.astype(jnp.float32)


if __name__ == "__main__":
    key = jax.random.PRNGKey(0)
    kx, kg, kx2, kx3, kg2 = jax.random.split(key, 5)

    # Module-scale case: (batch=2, seq=8, dim=32) -> lane-packed path (D < 128).
    B, S, D = 2, 8, 32
    x = jax.random.normal(kx, (B, S, D), jnp.float32)
    gamma = 1.0 + 0.1 * jax.random.normal(kg, (D,), jnp.float32)
    out = jax.block_until_ready(jax.jit(rmsnorm)(x, gamma))
    assert out.shape == x.shape and out.dtype == x.dtype
    err = float(jnp.max(jnp.abs(out - rmsnorm_ref(x, gamma))))
    assert err < 1e-4, f"packed-path max abs error: {err}"

    # Larger case exercising the packed path with grid > 1 row tiles.
    x_big = jax.random.normal(kx2, (4, 2048, D), jnp.float32)
    out_big = jax.block_until_ready(jax.jit(rmsnorm)(x_big, gamma))
    err_big = float(jnp.max(jnp.abs(out_big - rmsnorm_ref(x_big, gamma))))
    assert err_big < 1e-4, f"packed-path (tiled) max abs error: {err_big}"

    # General path (D >= 128) with native bf16 I/O (no wrapper-side casts).
    D2 = 256
    gamma2 = 1.0 + 0.1 * jax.random.normal(kg2, (D2,), jnp.float32)
    x_bf = jax.random.normal(kx3, (2, 512, D2), jnp.float32).astype(jnp.bfloat16)
    out_bf = jax.block_until_ready(jax.jit(rmsnorm)(x_bf, gamma2))
    assert out_bf.dtype == jnp.bfloat16 and out_bf.shape == x_bf.shape
    err_bf = float(jnp.max(jnp.abs(out_bf.astype(jnp.float32) - rmsnorm_ref(x_bf, gamma2))))
    assert err_bf < 5e-2, f"general-path bf16 max abs error: {err_bf}"

    print("KERNEL_OK")
</pallas_src>

<mosaic_0001>
module attributes {stable_mosaic.version = 11 : i64} {
  func.func @_rmsnorm_packed_kernel(%arg0: i32, %arg1: memref<4x128xf32, #tpu.memory_space<vmem>>, %arg2: memref<1x128xf32, #tpu.memory_space<vmem>>, %arg3: memref<128x128xf32, #tpu.memory_space<vmem>>, %arg4: memref<4x128xf32, #tpu.memory_space<vmem>>) attributes {dimension_semantics = [#tpu.dimension_semantics<parallel>], iteration_bounds = array<i64: 1>, scalar_prefetch = 0 : i64, scratch_operands = 0 : i64, tpu.core_type = #tpu.core_type<tc>, window_params = [{transform_indices = @transform_0, window_bounds = array<i64: 4, 128>}, {pipeline_mode = #tpu.pipeline_mode<synchronous>, transform_indices = @transform_1, window_bounds = array<i64: 1, 128>}, {pipeline_mode = #tpu.pipeline_mode<synchronous>, transform_indices = @transform_2, window_bounds = array<i64: 128, 128>}, {transform_indices = @transform_3, window_bounds = array<i64: 4, 128>}]} {
    %c0 = arith.constant 0 : index
    %c0_0 = arith.constant 0 : index
    %0 = vector.load %arg1[%c0, %c0_0] : memref<4x128xf32, #tpu.memory_space<vmem>>, vector<4x128xf32>
    %1 = arith.mulf %0, %0 : vector<4x128xf32>
    %c0_1 = arith.constant 0 : index
    %c0_2 = arith.constant 0 : index
    %2 = vector.load %arg3[%c0_1, %c0_2] : memref<128x128xf32, #tpu.memory_space<vmem>>, vector<128x128xf32>
    %cst = arith.constant dense<0.000000e+00> : vector<4x128xf32>
    %3 = tpu.matmul %1, %2, %cst {dimension_numbers = #tpu.dot_dimension_numbers<[1], [0], [0], [1], [0, 0, 1, 1], [], []>, precision = #tpu.contract_precision<fp32>} : vector<4x128xf32>, vector<128x128xf32>, vector<4x128xf32> -> vector<4x128xf32>
    %cst_3 = arith.constant 1.000000e-24 : f32
    %4 = vector.broadcast %cst_3 : f32 to vector<4x128xf32>
    %5 = arith.maximumf %3, %4 : vector<4x128xf32>
    %6 = math.rsqrt %5 : vector<4x128xf32>
    %7 = arith.mulf %0, %6 : vector<4x128xf32>
    %c0_4 = arith.constant 0 : index
    %c0_5 = arith.constant 0 : index
    %8 = vector.load %arg2[%c0_4, %c0_5] : memref<1x128xf32, #tpu.memory_space<vmem>>, vector<1x128xf32>
    %9 = vector.broadcast %8 : vector<1x128xf32> to vector<4x128xf32>
    %10 = arith.mulf %7, %9 : vector<4x128xf32>
    %c0_6 = arith.constant 0 : index
    %c0_7 = arith.constant 0 : index
    %11 = vector.load %arg4[%c0_6, %c0_7] : memref<4x128xf32, #tpu.memory_space<vmem>>, vector<4x128xf32>
    tpu.vector_store %arg4[%c0_6, %c0_7], %10 {strides = array<i32>} : memref<4x128xf32, #tpu.memory_space<vmem>>, vector<4x128xf32>,
    return
  }
  func.func @transform_0(%arg0: i32) -> (i32, i32) {
    %c0_i32 = arith.constant 0 : i32
    %c0_i32_0 = arith.constant 0 : i32
    return %arg0, %c0_i32 : i32, i32
  }
  func.func @transform_1(%arg0: i32) -> (i32, i32) {
    %c0_i32 = arith.constant 0 : i32
    %c0_i32_0 = arith.constant 0 : i32
    %c0_i32_1 = arith.constant 0 : i32
    return %c0_i32, %c0_i32_0 : i32, i32
  }
  func.func @transform_2(%arg0: i32) -> (i32, i32) {
    %c0_i32 = arith.constant 0 : i32
    %c0_i32_0 = arith.constant 0 : i32
    %c0_i32_1 = arith.constant 0 : i32
    return %c0_i32, %c0_i32_0 : i32, i32
  }
  func.func @transform_3(%arg0: i32) -> (i32, i32) {
    %c0_i32 = arith.constant 0 : i32
    %c0_i32_0 = arith.constant 0 : i32
    return %arg0, %c0_i32 : i32, i32
  }
}

</mosaic_0001>

<llo_original>
// kernel: tile.9
$region0: #{tile.9}
  %s0 = inlined_call_operand.vmem [shape: f32[4,32], index: 0, kind: input, shape index: {}]
  %s1 = inlined_call_operand.vmem [shape: f32[1,128], index: 1, kind: output, shape index: {}]
  $region1: #{tile.9} parent=0
    #allocation0 [shape = 'u8[4096]{0}', space=vmem, size = 0x1000, scoped, tag = 'scoped mem for output reshape']
    #allocation1 [shape = 'u8[4096]{0}', space=vmem, size = 0x1000, scoped, tag = 'scoped mem for input reshape']
    %s3 = ssub.s32 16, 1
    %v4 = vld [vmem:[%s0] sm:%s3]
    %5 = vst [vmem:[#allocation1] sm:%s3] %v4
    %v6 = vld [vmem:[#allocation1] sm:$0x1]
    %vm7 = vcmask 261120
    %8 = vst.msk [vmem:[#allocation0] sm:$0x1] %vm7, %v6
    %s9 = scalar_lea.vmem [#allocation1], 3
    %v10 = vld [vmem:[%s9] sm:$0x1]
    %11 = vrot.lane.b32.xlu0 %v10, 96
    %v12 = vpop.permute.xlu0 %11
    %vm13 = vcmask 1048320
    %14 = vst.msk [vmem:[#allocation0] sm:$0x1] %vm13, %v12
    %s15 = scalar_lea.vmem [#allocation1], 2
    %v16 = vld [vmem:[%s15] sm:$0x1]
    %17 = vrot.lane.b32.xlu0 %v16, 64
    %v18 = vpop.permute.xlu0 %17
    %vm19 = vcmask 785920
    %20 = vst.msk [vmem:[#allocation0] sm:$0x1] %vm19, %v18
    %s21 = scalar_lea.vmem [#allocation1], 1
    %v22 = vld [vmem:[%s21] sm:$0x1]
    %23 = vrot.lane.b32.xlu0 %v22, 32
    %v24 = vpop.permute.xlu0 %23
    %vm25 = vcmask 523520
    %26 = vst.msk [vmem:[#allocation0] sm:$0x1] %vm25, %v24
    %s28 = ssub.s32 2, 1
    %v29 = vld [vmem:[#allocation0] sm:%s28]
    %s31 = ssub.s32 2, 1
    %32 = vst [vmem:[%s1] sm:%s31] %v29

// kernel: tile.8
$region0: #{tile.8}
  #allocation0 [shape = 's32[1]{0}', space=sflag, size = 0x4, scoped, tag = 'scoped memory for tile.8']
  %s0 = inlined_call_operand.vmem [shape: f32[32], index: 0, kind: input, shape index: {}]
  %s1 = inlined_call_operand.vmem [shape: f32[4,32], index: 1, kind: output, shape index: {}]
  // Predicated region
  $region2: #{tile.8} parent=0 // pred_check
    _
  $region3: #{tile.8} parent=0 // pred_check_branch
    %3 = sbr.rel (0) target = $region5
  $region4: #{tile.8} parent=0 // pred_region
    _
  $region5: #{tile.8} parent=0 // pred_fallthru
    _
  %v4 = vld [vmem:[%s0] ss:$0 sm:$0xff]
  %5 = vst [vmem:[%s1] sm:$0xf] %v4

// kernel: rmsnorm.1
$region0: #{rmsnorm.1}
  #allocation0 [shape = 'u32[]', space=smem, size = 0x4, offset = 0x4, fixed_abs, tag = 'smem constant byte address 0x4 - core index']
  #allocation1 [shape = 'u32[72,128]{1,0:T(1,128)}', space=vmem, size = 0x9000, scoped, tag = 'internal scratch']
  %s0 = inlined_call_operand.vmem [shape: f32[4,128], index: 0, kind: input, shape index: {}]
  %s1 = inlined_call_operand.vmem [shape: f32[1,128], index: 1, kind: input, shape index: {}]
  %s2 = inlined_call_operand.vmem [shape: f32[128,128], index: 2, kind: input, shape index: {}]
  %s3 = inlined_call_operand.vmem [shape: f32[4,128], index: 3, kind: output, shape index: {}]
  %s4 = sld [smem:[#allocation0]]
  $region22: #{rmsnorm.1} parent=0
    _
  %s6 = ssub.s32 1, %s4
  %s7 = scalar_select 0, %s6, %s4
  // Predicated region
  $region2: #{rmsnorm.1} parent=0 // pred_check
    _
  $region3: #{rmsnorm.1} parent=0 // pred_check_branch
    %9 = sbr.rel (0) target = $region5
  $region4: #{rmsnorm.1} parent=0 // pred_region
    _
  $region5: #{rmsnorm.1} parent=0 // pred_fallthru
    _
  // Predicated region
  $region6: #{rmsnorm.1} parent=0 // pred_check
    _
  $region7: #{rmsnorm.1} parent=0 // pred_check_branch
    %11 = sbr.rel (0) target = $region9
  $region8: #{rmsnorm.1} parent=0 // pred_region
    _
  $region9: #{rmsnorm.1} parent=0 // pred_fallthru
    _
  // Predicated region
  $region10: #{rmsnorm.1} parent=0 // pred_check
    _
  $region11: #{rmsnorm.1} parent=0 // pred_check_branch
    %13 = sbr.rel (0) target = $region13
  $region12: #{rmsnorm.1} parent=0 // pred_region
    _
  $region13: #{rmsnorm.1} parent=0 // pred_fallthru
    _
  %v14 = vld [vmem:[%s0] sm:$0xf]
  %v15 = vmul.f32 %v14, %v14
  %v16 = vld [vmem:[%s2] sm:$0xff]
  %v17 = vld [vmem:[%s2 + $0x8] sm:$0xff]
  %v18 = vld [vmem:[%s2 + $0x10] sm:$0xff]
  %v19 = vld [vmem:[%s2 + $0x18] sm:$0xff]
  %v20 = vld [vmem:[%s2 + $0x20] sm:$0xff]
  %v21 = vld [vmem:[%s2 + $0x28] sm:$0xff]
  %v22 = vld [vmem:[%s2 + $0x30] sm:$0xff]
  %v23 = vld [vmem:[%s2 + $0x38] sm:$0xff]
  %v24 = vld [vmem:[%s2 + $0x40] sm:$0xff]
  %v25 = vld [vmem:[%s2 + $0x48] sm:$0xff]
  %v26 = vld [vmem:[%s2 + $0x50] sm:$0xff]
  %v27 = vld [vmem:[%s2 + $0x58] sm:$0xff]
  %v28 = vld [vmem:[%s2 + $0x60] sm:$0xff]
  %v29 = vld [vmem:[%s2 + $0x68] sm:$0xff]
  %v30 = vld [vmem:[%s2 + $0x70] sm:$0xff]
  %v31 = vld [vmem:[%s2 + $0x78] sm:$0xff]
  %v32 = vand.u32 %v31, 4294901760
  %33 = vmatpush.msra.mxu0 %v32
  %v34 = vand.u32 %v30, 4294901760
  %35 = vmatpush.msra.mxu0 %v34
  %v36 = vand.u32 %v29, 4294901760
  %37 = vmatpush.msra.mxu0 %v36
  %v38 = vand.u32 %v28, 4294901760
  %39 = vmatpush.msra.mxu0 %v38
  %v40 = vand.u32 %v27, 4294901760
  %41 = vmatpush.msra.mxu0 %v40
  %v42 = vand.u32 %v26, 4294901760
  %43 = vmatpush.msra.mxu0 %v42
  %v44 = vand.u32 %v25, 4294901760
  %45 = vmatpush.msra.mxu0 %v44
  %v46 = vand.u32 %v24, 4294901760
  %47 = vmatpush.msra.mxu0 %v46
  %v48 = vand.u32 %v23, 4294901760
  %49 = vmatpush.msra.mxu0 %v48
  %v50 = vand.u32 %v22, 4294901760
  %51 = vmatpush.msra.mxu0 %v50
  %v52 = vand.u32 %v21, 4294901760
  %53 = vmatpush.msra.mxu0 %v52
  %v54 = vand.u32 %v20, 4294901760
  %55 = vmatpush.msra.mxu0 %v54
  %v56 = vand.u32 %v19, 4294901760
  %57 = vmatpush.msra.mxu0 %v56
  %v58 = vand.u32 %v18, 4294901760
  %59 = vmatpush.msra.mxu0 %v58
  %v60 = vand.u32 %v17, 4294901760
  %61 = vmatpush.msra.mxu0 %v60
  %v62 = vand.u32 %v16, 4294901760
  %63 = vmatpush.msra.mxu0 %v62
  %v64 = vand.u32 %v15, 4294901760
  %v65 = vsub.f32 %v15, %v64
  %v66 = vand.u32 %v65, 4294901760
  %v67 = vsub.f32 %v65, %v66
  %v68 = vand.u32 %v67, 4294901760
  %69 = vmatmul.f32.gmra.mxu0 %v68
  %v70 = vpop.f32.mrf.mxu0
  %v71 = vadd.f32 0.0, %v70
  %72 = vdwg.mxu0
  %v73 = vand.u32 %v31, 4294901760
  %v74 = vsub.f32 %v31, %v73
  %v75 = vand.u32 %v74, 4294901760
  %v76 = vsub.f32 %v74, %v75
  %v77 = vand.u32 %v76, 4294901760
  %78 = vmatpush.msra.mxu0 %v77
  %v79 = vand.u32 %v30, 4294901760
  %v80 = vsub.f32 %v30, %v79
  %v81 = vand.u32 %v80, 4294901760
  %v82 = vsub.f32 %v80, %v81
  %v83 = vand.u32 %v82, 4294901760
  %84 = vmatpush.msra.mxu0 %v83
  %v85 = vand.u32 %v29, 4294901760
  %v86 = vsub.f32 %v29, %v85
  %v87 = vand.u32 %v86, 4294901760
  %v88 = vsub.f32 %v86, %v87
  %v89 = vand.u32 %v88, 4294901760
  %90 = vmatpush.msra.mxu0 %v89
  %v91 = vand.u32 %v28, 4294901760
  %v92 = vsub.f32 %v28, %v91
  %v93 = vand.u32 %v92, 4294901760
  %v94 = vsub.f32 %v92, %v93
  %v95 = vand.u32 %v94, 4294901760
  %96 = vmatpush.msra.mxu0 %v95
  %v97 = vand.u32 %v27, 4294901760
  %v98 = vsub.f32 %v27, %v97
  %v99 = vand.u32 %v98, 4294901760
  %v100 = vsub.f32 %v98, %v99
  %v101 = vand.u32 %v100, 4294901760
  %102 = vmatpush.msra.mxu0 %v101
  %v103 = vand.u32 %v26, 4294901760
  %v104 = vsub.f32 %v26, %v103
  %v105 = vand.u32 %v104, 4294901760
  %v106 = vsub.f32 %v104, %v105
  %v107 = vand.u32 %v106, 4294901760
  %108 = vmatpush.msra.mxu0 %v107
  %v109 = vand.u32 %v25, 4294901760
  %v110 = vsub.f32 %v25, %v109
  %v111 = vand.u32 %v110, 4294901760
  %v112 = vsub.f32 %v110, %v111
  %v113 = vand.u32 %v112, 4294901760
  %114 = vmatpush.msra.mxu0 %v113
  %v115 = vand.u32 %v24, 4294901760
  %v116 = vsub.f32 %v24, %v115
  %v117 = vand.u32 %v116, 4294901760
  %v118 = vsub.f32 %v116, %v117
  %v119 = vand.u32 %v118, 4294901760
  %120 = vmatpush.msra.mxu0 %v119
  %v121 = vand.u32 %v23, 4294901760
  %v122 = vsub.f32 %v23, %v121
  %v123 = vand.u32 %v122, 4294901760
  %v124 = vsub.f32 %v122, %v123
  %v125 = vand.u32 %v124, 4294901760
  %126 = vmatpush.msra.mxu0 %v125
  %v127 = vand.u32 %v22, 4294901760
  %v128 = vsub.f32 %v22, %v127
  %v129 = vand.u32 %v128, 4294901760
  %v130 = vsub.f32 %v128, %v129
  %v131 = vand.u32 %v130, 4294901760
  %132 = vmatpush.msra.mxu0 %v131
  %v133 = vand.u32 %v21, 4294901760
  %v134 = vsub.f32 %v21, %v133
  %v135 = vand.u32 %v134, 4294901760
  %v136 = vsub.f32 %v134, %v135
  %v137 = vand.u32 %v136, 4294901760
  %138 = vmatpush.msra.mxu0 %v137
  %v139 = vand.u32 %v20, 4294901760
  %v140 = vsub.f32 %v20, %v139
  %v141 = vand.u32 %v140, 4294901760
  %v142 = vsub.f32 %v140, %v141
  %v143 = vand.u32 %v142, 4294901760
  %144 = vmatpush.msra.mxu0 %v143
  %v145 = vand.u32 %v19, 4294901760
  %v146 = vsub.f32 %v19, %v145
  %v147 = vand.u32 %v146, 4294901760
  %v148 = vsub.f32 %v146, %v147
  %v149 = vand.u32 %v148, 4294901760
  %150 = vmatpush.msra.mxu0 %v149
  %v151 = vand.u32 %v18, 4294901760
  %v152 = vsub.f32 %v18, %v151
  %v153 = vand.u32 %v152, 4294901760
  %v154 = vsub.f32 %v152, %v153
  %v155 = vand.u32 %v154, 4294901760
  %156 = vmatpush.msra.mxu0 %v155
  %v157 = vand.u32 %v17, 4294901760
  %v158 = vsub.f32 %v17, %v157
  %v159 = vand.u32 %v158, 4294901760
  %v160 = vsub.f32 %v158, %v159
  %v161 = vand.u32 %v160, 4294901760
  %162 = vmatpush.msra.mxu0 %v161
  %v163 = vand.u32 %v16, 4294901760
  %v164 = vsub.f32 %v16, %v163
  %v165 = vand.u32 %v164, 4294901760
  %v166 = vsub.f32 %v164, %v165
  %v167 = vand.u32 %v166, 4294901760
  %168 = vmatpush.msra.mxu0 %v167
  %v169 = vand.u32 %v15, 4294901760
  %170 = vmatmul.f32.gmra.mxu0 %v169
  %v171 = vpop.f32.mrf.mxu0
  %v172 = vadd.f32 %v71, %v171
  %173 = vdwg.mxu0
  %v174 = vand.u32 %v31, 4294901760
  %v175 = vsub.f32 %v31, %v174
  %176 = vmatpush.msra.mxu0 %v175
  %v177 = vand.u32 %v30, 4294901760
  %v178 = vsub.f32 %v30, %v177
  %179 = vmatpush.msra.mxu0 %v178
  %v180 = vand.u32 %v29, 4294901760
  %v181 = vsub.f32 %v29, %v180
  %182 = vmatpush.msra.mxu0 %v181
  %v183 = vand.u32 %v28, 4294901760
  %v184 = vsub.f32 %v28, %v183
  %185 = vmatpush.msra.mxu0 %v184
  %v186 = vand.u32 %v27, 4294901760
  %v187 = vsub.f32 %v27, %v186
  %188 = vmatpush.msra.mxu0 %v187
  %v189 = vand.u32 %v26, 4294901760
  %v190 = vsub.f32 %v26, %v189
  %191 = vmatpush.msra.mxu0 %v190
  %v192 = vand.u32 %v25, 4294901760
  %v193 = vsub.f32 %v25, %v192
  %194 = vmatpush.msra.mxu0 %v193
  %v195 = vand.u32 %v24, 4294901760
  %v196 = vsub.f32 %v24, %v195
  %197 = vmatpush.msra.mxu0 %v196
  %v198 = vand.u32 %v23, 4294901760
  %v199 = vsub.f32 %v23, %v198
  %200 = vmatpush.msra.mxu0 %v199
  %v201 = vand.u32 %v22, 4294901760
  %v202 = vsub.f32 %v22, %v201
  %203 = vmatpush.msra.mxu0 %v202
  %v204 = vand.u32 %v21, 4294901760
  %v205 = vsub.f32 %v21, %v204
  %206 = vmatpush.msra.mxu0 %v205
  %v207 = vand.u32 %v20, 4294901760
  %v208 = vsub.f32 %v20, %v207
  %209 = vmatpush.msra.mxu0 %v208
  %v210 = vand.u32 %v19, 4294901760
  %v211 = vsub.f32 %v19, %v210
  %212 = vmatpush.msra.mxu0 %v211
  %v213 = vand.u32 %v18, 4294901760
  %v214 = vsub.f32 %v18, %v213
  %215 = vmatpush.msra.mxu0 %v214
  %v216 = vand.u32 %v17, 4294901760
  %v217 = vsub.f32 %v17, %v216
  %218 = vmatpush.msra.mxu0 %v217
  %v219 = vand.u32 %v16, 4294901760
  %v220 = vsub.f32 %v16, %v219
  %221 = vmatpush.msra.mxu0 %v220
  %v222 = vand.u32 %v15, 4294901760
  %v223 = vsub.f32 %v15, %v222
  %224 = vmatmul.f32.gmra.mxu0 %v223
  %v225 = vpop.f32.mrf.mxu0
  %v226 = vadd.f32 %v172, %v225
  %227 = vdwg.mxu0
  %v228 = vand.u32 %v31, 4294901760
  %229 = vmatpush.msra.mxu0 %v228
  %v230 = vand.u32 %v30, 4294901760
  %231 = vmatpush.msra.mxu0 %v230
  %v232 = vand.u32 %v29, 4294901760
  %233 = vmatpush.msra.mxu0 %v232
  %v234 = vand.u32 %v28, 4294901760
  %235 = vmatpush.msra.mxu0 %v234
  %v236 = vand.u32 %v27, 4294901760
  %237 = vmatpush.msra.mxu0 %v236
  %v238 = vand.u32 %v26, 4294901760
  %239 = vmatpush.msra.mxu0 %v238
  %v240 = vand.u32 %v25, 4294901760
  %241 = vmatpush.msra.mxu0 %v240
  %v242 = vand.u32 %v24, 4294901760
  %243 = vmatpush.msra.mxu0 %v242
  %v244 = vand.u32 %v23, 4294901760
  %245 = vmatpush.msra.mxu0 %v244
  %v246 = vand.u32 %v22, 4294901760
  %247 = vmatpush.msra.mxu0 %v246
  %v248 = vand.u32 %v21, 4294901760
  %249 = vmatpush.msra.mxu0 %v248
  %v250 = vand.u32 %v20, 4294901760
  %251 = vmatpush.msra.mxu0 %v250
  %v252 = vand.u32 %v19, 4294901760
  %253 = vmatpush.msra.mxu0 %v252
  %v254 = vand.u32 %v18, 4294901760
  %255 = vmatpush.msra.mxu0 %v254
  %v256 = vand.u32 %v17, 4294901760
  %257 = vmatpush.msra.mxu0 %v256
  %v258 = vand.u32 %v16, 4294901760
  %259 = vmatpush.msra.mxu0 %v258
  %v260 = vand.u32 %v15, 4294901760
  %v261 = vsub.f32 %v15, %v260
  %v262 = vand.u32 %v261, 4294901760
  %263 = vmatmul.f32.gmra.mxu0 %v262
  %v264 = vpop.f32.mrf.mxu0
  %v265 = vadd.f32 %v226, %v264
  %266 = vdwg.mxu0
  %v267 = vand.u32 %v31, 4294901760
  %v268 = vsub.f32 %v31, %v267
  %v269 = vand.u32 %v268, 4294901760
  %270 = vmatpush.msra.mxu0 %v269
  %v271 = vand.u32 %v30, 4294901760
  %v272 = vsub.f32 %v30, %v271
  %v273 = vand.u32 %v272, 4294901760
  %274 = vmatpush.msra.mxu0 %v273
  %v275 = vand.u32 %v29, 4294901760
  %v276 = vsub.f32 %v29, %v275
  %v277 = vand.u32 %v276, 4294901760
  %278 = vmatpush.msra.mxu0 %v277
  %v279 = vand.u32 %v28, 4294901760
  %v280 = vsub.f32 %v28, %v279
  %v281 = vand.u32 %v280, 4294901760
  %282 = vmatpush.msra.mxu0 %v281
  %v283 = vand.u32 %v27, 4294901760
  %v284 = vsub.f32 %v27, %v283
  %v285 = vand.u32 %v284, 4294901760
  %286 = vmatpush.msra.mxu0 %v285
  %v287 = vand.u32 %v26, 4294901760
  %v288 = vsub.f32 %v26, %v287
  %v289 = vand.u32 %v288, 4294901760
  %290 = vmatpush.msra.mxu0 %v289
  %v291 = vand.u32 %v25, 4294901760
  %v292 = vsub.f32 %v25, %v291
  %v293 = vand.u32 %v292, 4294901760
  %294 = vmatpush.msra.mxu0 %v293
  %v295 = vand.u32 %v24, 4294901760
  %v296 = vsub.f32 %v24, %v295
  %v297 = vand.u32 %v296, 4294901760
  %298 = vmatpush.msra.mxu0 %v297
  %v299 = vand.u32 %v23, 4294901760
  %v300 = vsub.f32 %v23, %v299
  %v301 = vand.u32 %v300, 4294901760
  %302 = vmatpush.msra.mxu0 %v301
  %v303 = vand.u32 %v22, 4294901760
  %v304 = vsub.f32 %v22, %v303
  %v305 = vand.u32 %v304, 4294901760
  %306 = vmatpush.msra.mxu0 %v305
  %v307 = vand.u32 %v21, 4294901760
  %v308 = vsub.f32 %v21, %v307
  %v309 = vand.u32 %v308, 4294901760
  %310 = vmatpush.msra.mxu0 %v309
  %v311 = vand.u32 %v20, 4294901760
  %v312 = vsub.f32 %v20, %v311
  %v313 = vand.u32 %v312, 4294901760
  %314 = vmatpush.msra.mxu0 %v313
  %v315 = vand.u32 %v19, 4294901760
  %v316 = vsub.f32 %v19, %v315
  %v317 = vand.u32 %v316, 4294901760
  %318 = vmatpush.msra.mxu0 %v317
  %v319 = vand.u32 %v18, 4294901760
  %v320 = vsub.f32 %v18, %v319
  %v321 = vand.u32 %v320, 4294901760
  %322 = vmatpush.msra.mxu0 %v321
  %v323 = vand.u32 %v17, 4294901760
  %v324 = vsub.f32 %v17, %v323
  %v325 = vand.u32 %v324, 4294901760
  %326 = vmatpush.msra.mxu0 %v325
  %v327 = vand.u32 %v16, 4294901760
  %v328 = vsub.f32 %v16, %v327
  %v329 = vand.u32 %v328, 4294901760
  %330 = vmatpush.msra.mxu0 %v329
  %v331 = vand.u32 %v15, 4294901760
  %332 = vmatmul.f32.gmra.mxu0 %v331
  %v333 = vpop.f32.mrf.mxu0
  %v334 = vadd.f32 %v265, %v333
  %335 = vdwg.mxu0
  %v336 = vand.u32 %v31, 4294901760
  %337 = vmatpush.msra.mxu0 %v336
  %v338 = vand.u32 %v30, 4294901760
  %339 = vmatpush.msra.mxu0 %v338
  %v340 = vand.u32 %v29, 4294901760
  %341 = vmatpush.msra.mxu0 %v340
  %v342 = vand.u32 %v28, 4294901760
  %343 = vmatpush.msra.mxu0 %v342
  %v344 = vand.u32 %v27, 4294901760
  %345 = vmatpush.msra.mxu0 %v344
  %v346 = vand.u32 %v26, 4294901760
  %347 = vmatpush.msra.mxu0 %v346
  %v348 = vand.u32 %v25, 4294901760
  %349 = vmatpush.msra.mxu0 %v348
  %v350 = vand.u32 %v24, 4294901760
  %351 = vmatpush.msra.mxu0 %v350
  %v352 = vand.u32 %v23, 4294901760
  %353 = vmatpush.msra.mxu0 %v352
  %v354 = vand.u32 %v22, 4294901760
  %355 = vmatpush.msra.mxu0 %v354
  %v356 = vand.u32 %v21, 4294901760
  %357 = vmatpush.msra.mxu0 %v356
  %v358 = vand.u32 %v20, 4294901760
  %359 = vmatpush.msra.mxu0 %v358
  %v360 = vand.u32 %v19, 4294901760
  %361 = vmatpush.msra.mxu0 %v360
  %v362 = vand.u32 %v18, 4294901760
  %363 = vmatpush.msra.mxu0 %v362
  %v364 = vand.u32 %v17, 4294901760
  %365 = vmatpush.msra.mxu0 %v364
  %v366 = vand.u32 %v16, 4294901760
  %367 = vmatpush.msra.mxu0 %v366
  %v368 = vand.u32 %v15, 4294901760
  %369 = vmatmul.f32.gmra.mxu0 %v368
  %v370 = vpop.f32.mrf.mxu0
  %v371 = vadd.f32 %v334, %v370
  %372 = vdwg.mxu0
  %v373 = vmax.f32 %v371, 1e-24
  %v374 = vrsqrt.pop %v373
  %v375 = vmul.f32 %v374, %v373
  %v376 = vmul.f32 %v375, %v374
  %v377 = vmul.f32 0.5, %v376
  %v378 = vsub.f32 1.5, %v377
  %v379 = vmul.f32 %v374, %v378
  %vm380 = vweird.f32 %v373
  %vm381 = vweird.f32 %v374
  %vm382 = vmor %vm380, %vm381
  %v383 = vsel %vm382, %v374, %v379
  %v384 = vmul.f32 %v14, %v383
  %v385 = vld [vmem:[%s1] sm:$0x1]
  %v387 = vperm.slane %v385, 0
  %v389 = vmul.f32 %v384, %v387
  %390 = vst [vmem:[%s3] sm:$0xf] %v389
  // Predicated region
  $region14: #{rmsnorm.1} parent=0 // pred_check
    _
  $region15: #{rmsnorm.1} parent=0 // pred_check_branch
    %392 = sbr.rel (0) target = $region17
  $region16: #{rmsnorm.1} parent=0 // pred_region
    _
  $region17: #{rmsnorm.1} parent=0 // pred_fallthru
    _
  // Predicated region
  $region18: #{rmsnorm.1} parent=0 // pred_check
    _
  $region19: #{rmsnorm.1} parent=0 // pred_check_branch
    %394 = sbr.rel (0) target = $region21
  $region20: #{rmsnorm.1} parent=0 // pred_region
    _
  $region21: #{rmsnorm.1} parent=0 // pred_fallthru
    _

</llo_original>
